<compile_context>
chip_gen: v7x
topology: tpu7x:2x2x1
jax: 0.10.0
libtpu: 0.0.40
codegen_flags: <defaults>
</compile_context>

<pallas_src>
import functools

import jax
import jax.numpy as jnp
from jax import lax
from jax.experimental import pallas as pl
from jax.experimental.pallas import tpu as pltpu


def _uniform_from_hash(idx_u32, seed_u32):
    """Uniform [0,1) f32 from a counter-based hash (lowbias32-style finalizer).

    Pure VPU integer ops -> lowers on Mosaic and on the interpret/CPU fallback
    (unlike pltpu.prng_seed / pltpu.prng_random_bits).
    """
    h = idx_u32 * jnp.uint32(0x9E3779B1) + seed_u32 * jnp.uint32(0x85EBCA6B)
    h = (h ^ (h >> 16)) * jnp.uint32(0x21F0AAAD)
    h = (h ^ (h >> 15)) * jnp.uint32(0x735A2D97)
    h = h ^ (h >> 15)
    mant = (h >> 9) | jnp.uint32(0x3F800000)            # float32 bits in [1, 2)
    return lax.bitcast_convert_type(mant, jnp.float32) - 1.0   # [0, 1)


def _gumbel_noise_mask_kernel(seed_ref, x_ref, o_ref, *, block_rows, eps):
    """Training path with Gumbel noise: out = ((x + g1 - g2) >= 0).astype(out)."""
    x = x_ref[...].astype(jnp.float32)
    rows, lanes = x_ref.shape

    # Globally unique element counter (grid offset folded in) so every block
    # and every seed gets an independent stream.  (int32 counter: fine for
    # arrays < 2^31 elements.)
    row = lax.broadcasted_iota(jnp.int32, (rows, lanes), 0) + pl.program_id(0) * block_rows
    col = lax.broadcasted_iota(jnp.int32, (rows, lanes), 1)
    idx = lax.bitcast_convert_type(row * lanes + col, jnp.uint32)
    seed = lax.bitcast_convert_type(seed_ref[0], jnp.uint32)
    u = _uniform_from_hash(idx, seed)

    # g1 - g2 of two independent Gumbels is Logistic; with the reference's eps
    # clamping: noise = log((u + eps) / (1 + eps - u)), |noise| < 18.5.
    # Only sign(x + noise) is needed, and
    #   x + log(r) >= 0   <=>   (u + eps) >= exp(-x) * (1 + eps - u)
    # which is decision-exact (including exp over/underflow: |noise| << 88)
    # and costs one transcendental per element instead of five.
    rhs = jnp.exp(-x) * ((1.0 + eps) - u)
    o_ref[...] = jnp.where(u + eps >= rhs, 1.0, 0.0).astype(o_ref.dtype)


def _hard_mask_kernel(x_ref, o_ref):
    """No-noise / eval path: out = (x >= 0).astype(out)."""
    o_ref[...] = jnp.where(x_ref[...] >= 0, 1.0, 0.0).astype(o_ref.dtype)


def gumbel_forward(x, gumbel_temp=1.0, gumbel_noise=True, training=True,
                   inference=False, eps=1e-8, seed=0):
    """Pallas implementation of Gumbel.forward (forward values).

    gumbel_temp only rescales the soft value / gradients; the hard forward
    value is temp-independent (temp > 0), so it drops out of the kernel.
    """
    # TODO(synk): recoder.add(...) bookkeeping and the .detach() straight-through
    # gradient trick are training-framework concerns with no forward-pass Pallas
    # equivalent; forward values are identical.
    if gumbel_temp <= 0:
        raise ValueError("gumbel_temp must be positive")

    orig_shape = x.shape
    total = x.size
    add_noise = bool(gumbel_noise) and bool(training)

    # Lane-dense layout: flatten, pad to a multiple of 128, view as (rows, 128).
    flat = x.reshape(-1)
    pad = (-total) % 128
    if pad:
        flat = jnp.pad(flat, (0, pad))
    rows = flat.size // 128
    xs = flat.reshape(rows, 128)

    # Block choice: whole slab when tiny; otherwise >= 2 blocks (v7x dual-TC)
    # capped at 4096x128 f32 = 2 MiB per block (fits v5e's default scoped VMEM
    # with room to spare when double-buffered in + out).
    if rows <= 256:
        block_rows = rows
    else:
        half = ((rows + 1) // 2 + 7) // 8 * 8        # round_up(cdiv(rows, 2), 8)
        block_rows = min(4096, half)
    grid = (pl.cdiv(rows, block_rows),)

    out_struct = jax.ShapeDtypeStruct((rows, 128), x.dtype)
    cparams = pltpu.CompilerParams(dimension_semantics=("parallel",))

    if add_noise:
        kernel = functools.partial(_gumbel_noise_mask_kernel,
                                   block_rows=block_rows, eps=float(eps))
        out2d = pl.pallas_call(
            kernel,
            out_shape=out_struct,
            grid_spec=pltpu.PrefetchScalarGridSpec(
                num_scalar_prefetch=1,
                grid=grid,
                in_specs=[pl.BlockSpec((block_rows, 128), lambda i, s: (i, 0))],
                out_specs=pl.BlockSpec((block_rows, 128), lambda i, s: (i, 0)),
            ),
            compiler_params=cparams,
        )(jnp.asarray([seed], dtype=jnp.int32), xs)
    else:
        out2d = pl.pallas_call(
            _hard_mask_kernel,
            out_shape=out_struct,
            grid=grid,
            in_specs=[pl.BlockSpec((block_rows, 128), lambda i: (i, 0))],
            out_specs=pl.BlockSpec((block_rows, 128), lambda i: (i, 0)),
            compiler_params=cparams,
        )(xs)

    out = out2d.reshape(-1)[:total].reshape(orig_shape)
    if (not training) and inference:
        return out != 0            # eval/inference path: bool (x >= 0)
    return out                     # float 0/1 (training & eval-train paths)


if __name__ == "__main__":
    key = jax.random.PRNGKey(0)
    N, C, H, W = 2, 4, 16, 16

    # --- main training-mode forward with Gumbel noise ---
    x = jax.random.normal(key, (N, C, H, W), jnp.float32)
    out = gumbel_forward(x, gumbel_temp=1.0, gumbel_noise=True, training=True, seed=42)
    out = jax.block_until_ready(out)
    assert out.shape == x.shape and out.dtype == x.dtype
    assert bool(jnp.all(jnp.isfinite(out)))                       # module's NaN assert
    assert bool(jnp.all((out == 0.0) | (out == 1.0)))             # hard 0/1 values

    # --- deterministic no-noise path must match the exact threshold ---
    x_det = jnp.linspace(-3.0, 3.0, N * C * H * W,
                         dtype=jnp.float32).reshape(N, C, H, W)
    out_det = gumbel_forward(x_det, gumbel_temp=1.0, gumbel_noise=False, training=True)
    assert bool(jnp.all(out_det == (x_det >= 0).astype(jnp.float32)))

    # --- eval paths ---
    out_eval = gumbel_forward(x_det, training=False, inference=False)
    assert out_eval.dtype == jnp.float32
    assert bool(jnp.all(out_eval == (x_det >= 0).astype(jnp.float32)))
    out_inf = gumbel_forward(x_det, training=False, inference=True)
    assert out_inf.dtype == jnp.bool_
    assert bool(jnp.all(out_inf == (x_det >= 0)))

    # --- noise path sanity: logistic noise is bounded (|noise| < 18.5 for
    #     eps=1e-8), so decisions at |x| = 100 are unchanged ---
    big = jnp.full((N, C, H, W), 100.0, jnp.float32)
    assert bool(jnp.all(gumbel_forward(big, seed=1) == 1.0))
    assert bool(jnp.all(gumbel_forward(-big, seed=2) == 0.0))

    # --- noise is active and roughly unbiased at the decision boundary,
    #     and different seeds give different streams ---
    zeros = jnp.zeros((64, 128), jnp.float32)
    m7 = gumbel_forward(zeros, seed=7)
    m8 = gumbel_forward(zeros, seed=8)
    frac = float(jnp.mean(m7))
    assert 0.35 < frac < 0.65
    assert bool(jnp.any(m7 != m8))

    print("KERNEL_OK")
</pallas_src>

<mosaic_0001>
module attributes {stable_mosaic.version = 11 : i64} {
  func.func @_gumbel_noise_mask_kernel(%arg0: i32, %arg1: memref<1xi32, #tpu.memory_space<smem>>, %arg2: memref<16x128xf32, #tpu.memory_space<vmem>>, %arg3: memref<16x128xf32, #tpu.memory_space<vmem>>) attributes {dimension_semantics = [#tpu.dimension_semantics<parallel>], iteration_bounds = array<i64: 1>, scalar_prefetch = 1 : i64, scratch_operands = 0 : i64, tpu.core_type = #tpu.core_type<tc>, window_params = [{transform_indices = @transform_0, window_bounds = array<i64: 16, 128>}, {transform_indices = @transform_1, window_bounds = array<i64: 16, 128>}]} {
    %c0 = arith.constant 0 : index
    %c0_0 = arith.constant 0 : index
    %0 = vector.load %arg2[%c0, %c0_0] : memref<16x128xf32, #tpu.memory_space<vmem>>, vector<16x128xf32>
    %1 = tpu.iota {dimensions = array<i32: 0>} : vector<16x128xi32>
    %c16_i32 = arith.constant 16 : i32
    %2 = arith.muli %arg0, %c16_i32 : i32
    %3 = vector.broadcast %2 : i32 to vector<16x128xi32>
    %4 = arith.addi %1, %3 : vector<16x128xi32>
    %5 = tpu.iota {dimensions = array<i32: 1>} : vector<16x128xi32>
    %c128_i32 = arith.constant 128 : i32
    %6 = vector.broadcast %c128_i32 : i32 to vector<16x128xi32>
    %7 = arith.muli %4, %6 : vector<16x128xi32>
    %8 = arith.addi %7, %5 : vector<16x128xi32>
    %9 = tpu.bitcast %8 : vector<16x128xi32> -> vector<16x128xi32>
    %c0_1 = arith.constant 0 : index
    %10 = memref.load %arg1[%c0_1] : memref<1xi32, #tpu.memory_space<smem>>
    %11 = arith.bitcast %10 : i32 to i32
    %c-1640531535_i32 = arith.constant -1640531535 : i32
    %12 = vector.broadcast %c-1640531535_i32 : i32 to vector<16x128xi32>
    %13 = arith.muli %9, %12 : vector<16x128xi32>
    %c-2048144789_i32 = arith.constant -2048144789 : i32
    %14 = arith.muli %11, %c-2048144789_i32 : i32
    %15 = vector.broadcast %14 : i32 to vector<16x128xi32>
    %16 = arith.addi %13, %15 : vector<16x128xi32>
    %c16_i32_2 = arith.constant 16 : i32
    %17 = vector.broadcast %c16_i32_2 : i32 to vector<16x128xi32>
    %18 = arith.shrui %16, %17 : vector<16x128xi32>
    %19 = arith.xori %16, %18 : vector<16x128xi32>
    %c569420461_i32 = arith.constant 569420461 : i32
    %20 = vector.broadcast %c569420461_i32 : i32 to vector<16x128xi32>
    %21 = arith.muli %19, %20 : vector<16x128xi32>
    %c15_i32 = arith.constant 15 : i32
    %22 = vector.broadcast %c15_i32 : i32 to vector<16x128xi32>
    %23 = arith.shrui %21, %22 : vector<16x128xi32>
    %24 = arith.xori %21, %23 : vector<16x128xi32>
    %c1935289751_i32 = arith.constant 1935289751 : i32
    %25 = vector.broadcast %c1935289751_i32 : i32 to vector<16x128xi32>
    %26 = arith.muli %24, %25 : vector<16x128xi32>
    %c15_i32_3 = arith.constant 15 : i32
    %27 = vector.broadcast %c15_i32_3 : i32 to vector<16x128xi32>
    %28 = arith.shrui %26, %27 : vector<16x128xi32>
    %29 = arith.xori %26, %28 : vector<16x128xi32>
    %c9_i32 = arith.constant 9 : i32
    %30 = vector.broadcast %c9_i32 : i32 to vector<16x128xi32>
    %31 = arith.shrui %29, %30 : vector<16x128xi32>
    %c1065353216_i32 = arith.constant 1065353216 : i32
    %32 = vector.broadcast %c1065353216_i32 : i32 to vector<16x128xi32>
    %33 = arith.ori %31, %32 : vector<16x128xi32>
    %34 = tpu.bitcast %33 : vector<16x128xi32> -> vector<16x128xf32>
    %cst = arith.constant 1.000000e+00 : f32
    %35 = vector.broadcast %cst : f32 to vector<16x128xf32>
    %36 = arith.subf %34, %35 : vector<16x128xf32>
    %cst_4 = arith.constant 0.000000e+00 : f32
    %37 = vector.broadcast %cst_4 : f32 to vector<16x128xf32>
    %38 = arith.subf %37, %0 : vector<16x128xf32>
    %39 = math.exp %38 : vector<16x128xf32>
    %cst_5 = arith.constant 1.000000e+00 : f32
    %40 = vector.broadcast %cst_5 : f32 to vector<16x128xf32>
    %41 = arith.subf %40, %36 : vector<16x128xf32>
    %42 = arith.mulf %39, %41 : vector<16x128xf32>
    %cst_6 = arith.constant 9.99999993E-9 : f32
    %43 = vector.broadcast %cst_6 : f32 to vector<16x128xf32>
    %44 = arith.addf %36, %43 : vector<16x128xf32>
    %45 = arith.cmpf oge, %44, %42 : vector<16x128xf32>
    %cst_7 = arith.constant 1.000000e+00 : f32
    %cst_8 = arith.constant 0.000000e+00 : f32
    %46 = vector.broadcast %cst_7 : f32 to vector<16x128xf32>
    %47 = vector.broadcast %cst_8 : f32 to vector<16x128xf32>
    %48 = arith.select %45, %46, %47 : vector<16x128xi1>, vector<16x128xf32>
    %c0_9 = arith.constant 0 : index
    %c0_10 = arith.constant 0 : index
    %49 = vector.load %arg3[%c0_9, %c0_10] : memref<16x128xf32, #tpu.memory_space<vmem>>, vector<16x128xf32>
    tpu.vector_store %arg3[%c0_9, %c0_10], %48 {strides = array<i32>} : memref<16x128xf32, #tpu.memory_space<vmem>>, vector<16x128xf32>,
    return
  }
  func.func @transform_0(%arg0: i32, %arg1: memref<1xi32, #tpu.memory_space<smem>>) -> (i32, i32) {
    %c0_i32 = arith.constant 0 : i32
    %c0_i32_0 = arith.constant 0 : i32
    return %arg0, %c0_i32 : i32, i32
  }
  func.func @transform_1(%arg0: i32, %arg1: memref<1xi32, #tpu.memory_space<smem>>) -> (i32, i32) {
    %c0_i32 = arith.constant 0 : i32
    %c0_i32_0 = arith.constant 0 : i32
    return %arg0, %c0_i32 : i32, i32
  }
}

</mosaic_0001>

<llo_original>
// kernel: tpu_custom_call.1
$region0: #{tpu_custom_call.1}
  #allocation0 [shape = 'u32[]', space=smem, size = 0x4, offset = 0x4, fixed_abs, tag = 'smem constant byte address 0x4 - core index']
  #allocation1 [shape = 'u32[144,128]{1,0:T(1,128)}', space=vmem, size = 0x12000, scoped, tag = 'internal scratch']
  #allocation2 [shape = 's32[1]{0}', space=sflag, size = 0x4, scoped, tag = 'scoped memory for tpu_custom_call.1']
  #allocation3 [shape = 's32[1]{0:T(128)S(6)}', space=smem, size = 0x200, scoped, tag = 'prefetched SMEM operand 0']
  %s0 = inlined_call_operand.<no memory space> [shape: s32[1], index: 0, kind: input, shape index: {}]
  %s1 = inlined_call_operand.hbm [shape: f32[16,128], index: 1, kind: input, shape index: {}]
  %s2 = inlined_call_operand.hbm [shape: f32[16,128], index: 2, kind: output, shape index: {}]
  %s3 = sld [smem:[#allocation0]]
  $region18: #{tpu_custom_call.1} parent=0
    _
  %s5 = ssub.s32 1, %s3
  %s6 = scalar_select 0, %s5, %s3
  %7 = sst [smem:[#allocation3]] %s0
  $region1: #{tpu_custom_call.1} parent=0
    #allocation4 [shape = 'u8[8192]{0}', space=vmem, size = 0x2000, scoped, tag = 'input window, operand 1, single buffered']
    #allocation5 [shape = 's32[1]{0}', space=sflag, size = 0x4, scoped, tag = 'scoped memory for tpu_custom_call.1']
    #allocation6 [shape = 's32[1]{0}', space=sflag, size = 0x4, scoped, tag = 'scoped memory for tpu_custom_call.1']
    #allocation7 [shape = 'u8[8192]{0}', space=vmem, size = 0x2000, scoped, tag = 'output window, operand 0, single buffered']
    %8 = vsyncpa [#allocation5], 0
    %9 = vsyncpa [#allocation6], 0
    // Predicated region
    $region2: #{tpu_custom_call.1} parent=1 // pred_check
      _
    $region3: #{tpu_custom_call.1} parent=1 // pred_check_branch
      %11 = sbr.rel (0) target = $region5
    $region4: #{tpu_custom_call.1} parent=1 // pred_region
      %s13 = ssub.s32 256, 256
      %14 = vsyncadd [#allocation5], %s13
      %s15 = sshll.u32 [#allocation4], 4
      %s16 = int_to_ptr.vmem [resolvable:$true] %s15
      %21 = dma.hbm_to_vmem [thread:$0]  %s1, 256, %s16, [#allocation5], 128, 128, 8
    $region5: #{tpu_custom_call.1} parent=1 // pred_fallthru
      _
    // Predicated region
    $region6: #{tpu_custom_call.1} parent=1 // pred_check
      _
    $region7: #{tpu_custom_call.1} parent=1 // pred_check_branch
      %23 = sbr.rel (0) target = $region9
    $region8: #{tpu_custom_call.1} parent=1 // pred_region
      %24 = dma.done [#allocation5], 256
    $region9: #{tpu_custom_call.1} parent=1 // pred_fallthru
      _
    %v25 = vld [vmem:[#allocation4] sm:$0xff]
    %v26 = vld [vmem:[#allocation4 + $0x8] sm:$0xff]
    %v27 = vlaneseq
    %v28 = vshrl.u32 %v27, 7
    %v29 = vadd.s32 %v28, 8
    %s30 = smul.u32 0, 16
    %v31 = vstv %s30
    %v32 = vadd.s32 %v28, %v31
    %v33 = vadd.s32 %v29, %v31
    %v34 = vlaneseq
    %v35 = vand.u32 %v34, 127
    %v36 = vmul.u32 %v32, 128
    %v37 = vmul.u32 %v33, 128
    %v38 = vadd.s32 %v36, %v35
    %v39 = vadd.s32 %v37, %v35
    %s40 = sld [smem:[#allocation3]]
    %v41 = vmul.u32 %v38, 2654435761
    %v42 = vmul.u32 %v39, 2654435761
    %s43 = smul.u32 %s40, 2246822507
    %v44 = vstv %s43
    %v45 = vadd.s32 %v41, %v44
    %v46 = vadd.s32 %v42, %v44
    %v47 = vshrl.u32 %v45, 16
    %v48 = vshrl.u32 %v46, 16
    %v49 = vxor.u32 %v45, %v47
    %v50 = vxor.u32 %v46, %v48
    %v51 = vmul.u32 %v49, 569420461
    %v52 = vmul.u32 %v50, 569420461
    %v53 = vshrl.u32 %v51, 15
    %v54 = vshrl.u32 %v52, 15
    %v55 = vxor.u32 %v51, %v53
    %v56 = vxor.u32 %v52, %v54
    %v57 = vmul.u32 %v55, 1935289751
    %v58 = vmul.u32 %v56, 1935289751
    %v59 = vshrl.u32 %v57, 15
    %v60 = vshrl.u32 %v58, 15
    %v61 = vxor.u32 %v57, %v59
    %v62 = vxor.u32 %v58, %v60
    %v63 = vshrl.u32 %v61, 9
    %v64 = vshrl.u32 %v62, 9
    %v65 = vor.u32 %v63, 1065353216
    %v66 = vor.u32 %v64, 1065353216
    %v69 = vsub.f32 %v65, 1.0
    %v70 = vsub.f32 %v66, 1.0
    %v71 = vsub.f32 0.0, %v25
    %v72 = vsub.f32 0.0, %v26
    %v73 = vmul.f32 %v71, 1.442695
    %v74 = vpow.pop %v73
    %v75 = vmul.f32 %v72, 1.442695
    %v76 = vpow.pop %v75
    %v77 = vsub.f32 1.0, %v69
    %v78 = vsub.f32 1.0, %v70
    %v79 = vmul.f32 %v74, %v77
    %v80 = vmul.f32 %v76, %v78
    %v81 = vadd.f32 %v69, 1e-08
    %v82 = vadd.f32 %v70, 1e-08
    %vm83 = vcmp.ge.f32.partialorder %v81, %v79
    %vm84 = vcmp.ge.f32.partialorder %v82, %v80
    %v85 = vsel %vm83, 1.0, 0.0
    %v86 = vsel %vm84, 1.0, 0.0
    %87 = vst [vmem:[#allocation7] sm:$0xff] %v85
    %88 = vst [vmem:[#allocation7 + $0x8] sm:$0xff] %v86
    // Predicated region
    $region10: #{tpu_custom_call.1} parent=1 // pred_check
      _
    $region11: #{tpu_custom_call.1} parent=1 // pred_check_branch
      %90 = sbr.rel (0) target = $region13
    $region12: #{tpu_custom_call.1} parent=1 // pred_region
      %s92 = ssub.s32 256, 256
      %93 = vsyncadd [#allocation6], %s92
      %s94 = sshll.u32 [#allocation7], 4
      %s95 = int_to_ptr.vmem [resolvable:$true] %s94
      %100 = dma.vmem_to_hbm [thread:$0]  %s95, 256, %s2, [#allocation6], 128, 128, 8
    $region13: #{tpu_custom_call.1} parent=1 // pred_fallthru
      _
    // Predicated region
    $region14: #{tpu_custom_call.1} parent=1 // pred_check
      _
    $region15: #{tpu_custom_call.1} parent=1 // pred_check_branch
      %102 = sbr.rel (0) target = $region17
    $region16: #{tpu_custom_call.1} parent=1 // pred_region
      %103 = dma.done [#allocation6], 256
    $region17: #{tpu_custom_call.1} parent=1 // pred_fallthru
      _
    %104 = vsyncpa [#allocation5], 1
    %105 = vsyncpa [#allocation6], 1

</llo_original>
